<compile_context>
chip_gen: v5e
topology: v5e:2x2
jax: 0.10.0
libtpu: 0.0.40
codegen_flags: <defaults>
</compile_context>

<pallas_src>
import functools

import jax
import jax.numpy as jnp
from jax import lax
from jax.experimental import pallas as pl
from jax.experimental.pallas import tpu as pltpu

_DROP_P = 0.2
_BN_EPS = 1e-5
_LANE = 128      # lane-dense feature padding
_SUBLANE = 8     # sublane batch padding


def _round_up(n, m):
    return ((n + m - 1) // m) * m


def _fused_mlp_kernel(*refs, n_layers, batch_real, drop_p, bn_eps):
    """Entire DropoutBayesianModel forward in a single kernel.

    Positional refs layout (all VMEM, padded shapes):
      [0]                               x        [Bp, F0p]
      per hidden layer i (i < n_layers-1), 7 refs:
          wmu, wstd, epsw               [Fip, F(i+1)p]   (pre-transposed [in, out])
          bmu, bstd, epsb               [1,   F(i+1)p]
          drop_u (uniform [0,1))        [Bp,  F(i+1)p]
      final layer, 6 refs: wmu, wstd, epsw, bmu, bstd, epsb
      [-1]                              out      [Bp, Flast_p]
    """
    o_ref = refs[-1]
    idx = 0
    x = refs[idx][...]
    idx += 1
    b_pad = x.shape[0]
    inv_keep = 1.0 / (1.0 - drop_p)

    for li in range(n_layers):
        wmu, wstd, epsw = refs[idx][...], refs[idx + 1][...], refs[idx + 2][...]
        bmu, bstd, epsb = refs[idx + 3][...], refs[idx + 4][...], refs[idx + 5][...]
        idx += 6

        # Reparameterized Bayesian linear (BnnLayer).  exp() -> EUP slot, cheap.
        w = wmu + jnp.exp(wstd) * epsw          # [in_p, out_p]
        b = bmu + jnp.exp(bstd) * epsb          # [1,   out_p]
        h = lax.dot_general(x, w, (((1,), (0,)), ((), ())),
                            preferred_element_type=jnp.float32) + b   # [Bp, out_p]

        if li < n_layers - 1:
            u = refs[idx][...]
            idx += 1

            # BatchNorm1d (training): biased stats over the REAL batch rows only.
            if b_pad == batch_real:
                mean = jnp.mean(h, axis=0, keepdims=True)
                var = jnp.mean((h - mean) ** 2, axis=0, keepdims=True)
            else:
                row = lax.broadcasted_iota(jnp.int32, h.shape, 0)
                valid = (row < batch_real).astype(jnp.float32)
                inv_n = 1.0 / float(batch_real)
                mean = jnp.sum(h * valid, axis=0, keepdims=True) * inv_n
                var = jnp.sum(((h - mean) ** 2) * valid, axis=0,
                              keepdims=True) * inv_n
            y = (h - mean) * lax.rsqrt(var + bn_eps)        # gamma=1, beta=0

            # ReLU
            y = jnp.maximum(y, 0.0)

            # Dropout(p), training mode: keep where u >= p, scale kept by 1/(1-p).
            keep = u >= drop_p
            x = jnp.where(keep, y * inv_keep, 0.0)
        else:
            x = h

    o_ref[...] = x


def init_bnn_layer_params(key, in_features, out_features):
    """Matches BnnLayer.reset_parameters; weights stored pre-transposed [in, out]."""
    std = (2.0 / in_features) ** 0.5                    # kaiming normal, fan_in, relu
    wmu = std * jax.random.normal(key, (in_features, out_features), jnp.float32)
    wstd = jnp.full((in_features, out_features), -5.0, jnp.float32)
    bmu = jnp.zeros((1, out_features), jnp.float32)
    bstd = jnp.full((1, out_features), -5.0, jnp.float32)
    return wmu, wstd, bmu, bstd


def init_dropout_bayesian_model(key, num_features):
    assert len(num_features) >= 3, "at least need two values to create an mlp"
    keys = jax.random.split(key, len(num_features) - 1)
    return [init_bnn_layer_params(keys[i], num_features[i], num_features[i + 1])
            for i in range(len(num_features) - 1)]


def dropout_bayesian_model_forward(x, params, sample_key, dropout_key):
    """Forward pass of DropoutBayesianModel (training-mode semantics).

    params: list of (wmu[in,out], wstd[in,out], bmu[1,out], bstd[1,out]).
    sample_key: key for the weight/bias reparameterization noise (fresh per call).
    dropout_key: key for the dropout masks (fresh per call).
    """
    n_layers = len(params)
    batch, in0 = x.shape
    feat = [in0] + [p[0].shape[1] for p in params]

    b_pad = _round_up(batch, _SUBLANE)
    feat_pad = [_round_up(f, _LANE) for f in feat]

    eps_keys = jax.random.split(sample_key, 2 * n_layers)
    drop_keys = jax.random.split(dropout_key, max(n_layers - 1, 1))

    # Input, zero-padded to lane/sublane alignment.
    inputs = [jnp.pad(x, ((0, b_pad - batch), (0, feat_pad[0] - in0)))]

    for i, (wmu, wstd, bmu, bstd) in enumerate(params):
        fi, fo = wmu.shape
        fip, fop = feat_pad[i], feat_pad[i + 1]
        epsw = jax.random.normal(eps_keys[2 * i], (fi, fo), jnp.float32)
        epsb = jax.random.normal(eps_keys[2 * i + 1], (1, fo), jnp.float32)
        # Zero-pad mu AND eps so the padded region of the sampled weight/bias is
        # exactly zero (mu=0, eps=0 -> w = 0 + exp(std)*0 = 0).
        pad_w = ((0, fip - fi), (0, fop - fo))
        pad_b = ((0, 0), (0, fop - fo))
        inputs += [jnp.pad(wmu, pad_w), jnp.pad(wstd, pad_w), jnp.pad(epsw, pad_w),
                   jnp.pad(bmu, pad_b), jnp.pad(bstd, pad_b), jnp.pad(epsb, pad_b)]
        if i < n_layers - 1:
            u = jax.random.uniform(drop_keys[i], (b_pad, fop), jnp.float32)
            inputs.append(u)

    kernel = functools.partial(_fused_mlp_kernel, n_layers=n_layers,
                               batch_real=batch, drop_p=_DROP_P, bn_eps=_BN_EPS)
    vmem = pl.BlockSpec(memory_space=pltpu.MemorySpace.VMEM)

    out_pad = pl.pallas_call(
        kernel,
        out_shape=jax.ShapeDtypeStruct((b_pad, feat_pad[-1]), jnp.float32),
        in_specs=[vmem] * len(inputs),
        out_specs=vmem,
    )(*inputs)

    # Strip padding in the wrapper (layout plumbing only).
    return out_pad[:batch, :feat[-1]]


if __name__ == "__main__":
    # Architecture: DropoutBayesianModel(16, 32, 8)
    num_features = (16, 32, 8)
    batch = 8

    root = jax.random.PRNGKey(0)
    k_param, k_input, k_sample, k_drop = jax.random.split(root, 4)

    params = init_dropout_bayesian_model(k_param, num_features)
    x = jax.random.normal(k_input, (batch, num_features[0]), jnp.float32)

    out = dropout_bayesian_model_forward(x, params, k_sample, k_drop)
    out = jax.block_until_ready(out)

    assert out.shape == (batch, num_features[-1])
    assert out.dtype == jnp.float32
    print("KERNEL_OK")
</pallas_src>

<mosaic_0001>
module attributes {stable_mosaic.version = 11 : i64} {
  func.func @_fused_mlp_kernel(%arg0: memref<8x128xf32, #tpu.memory_space<vmem>>, %arg1: memref<128x128xf32, #tpu.memory_space<vmem>>, %arg2: memref<128x128xf32, #tpu.memory_space<vmem>>, %arg3: memref<128x128xf32, #tpu.memory_space<vmem>>, %arg4: memref<1x128xf32, #tpu.memory_space<vmem>>, %arg5: memref<1x128xf32, #tpu.memory_space<vmem>>, %arg6: memref<1x128xf32, #tpu.memory_space<vmem>>, %arg7: memref<8x128xf32, #tpu.memory_space<vmem>>, %arg8: memref<128x128xf32, #tpu.memory_space<vmem>>, %arg9: memref<128x128xf32, #tpu.memory_space<vmem>>, %arg10: memref<128x128xf32, #tpu.memory_space<vmem>>, %arg11: memref<1x128xf32, #tpu.memory_space<vmem>>, %arg12: memref<1x128xf32, #tpu.memory_space<vmem>>, %arg13: memref<1x128xf32, #tpu.memory_space<vmem>>, %arg14: memref<8x128xf32, #tpu.memory_space<vmem>>) attributes {dimension_semantics = [], scalar_prefetch = 0 : i64, scratch_operands = 0 : i64, tpu.core_type = #tpu.core_type<tc>} {
    %c0 = arith.constant 0 : index
    %c0_0 = arith.constant 0 : index
    %0 = vector.load %arg0[%c0, %c0_0] : memref<8x128xf32, #tpu.memory_space<vmem>>, vector<8x128xf32>
    %c0_1 = arith.constant 0 : index
    %c0_2 = arith.constant 0 : index
    %1 = vector.load %arg1[%c0_1, %c0_2] : memref<128x128xf32, #tpu.memory_space<vmem>>, vector<128x128xf32>
    %c0_3 = arith.constant 0 : index
    %c0_4 = arith.constant 0 : index
    %2 = vector.load %arg2[%c0_3, %c0_4] : memref<128x128xf32, #tpu.memory_space<vmem>>, vector<128x128xf32>
    %c0_5 = arith.constant 0 : index
    %c0_6 = arith.constant 0 : index
    %3 = vector.load %arg3[%c0_5, %c0_6] : memref<128x128xf32, #tpu.memory_space<vmem>>, vector<128x128xf32>
    %c0_7 = arith.constant 0 : index
    %c0_8 = arith.constant 0 : index
    %4 = vector.load %arg4[%c0_7, %c0_8] : memref<1x128xf32, #tpu.memory_space<vmem>>, vector<1x128xf32>
    %c0_9 = arith.constant 0 : index
    %c0_10 = arith.constant 0 : index
    %5 = vector.load %arg5[%c0_9, %c0_10] : memref<1x128xf32, #tpu.memory_space<vmem>>, vector<1x128xf32>
    %c0_11 = arith.constant 0 : index
    %c0_12 = arith.constant 0 : index
    %6 = vector.load %arg6[%c0_11, %c0_12] : memref<1x128xf32, #tpu.memory_space<vmem>>, vector<1x128xf32>
    %7 = math.exp %2 : vector<128x128xf32>
    %8 = arith.mulf %7, %3 : vector<128x128xf32>
    %9 = arith.addf %1, %8 : vector<128x128xf32>
    %10 = math.exp %5 : vector<1x128xf32>
    %11 = arith.mulf %10, %6 : vector<1x128xf32>
    %12 = arith.addf %4, %11 : vector<1x128xf32>
    %cst = arith.constant dense<0.000000e+00> : vector<8x128xf32>
    %13 = tpu.matmul %0, %9, %cst {dimension_numbers = #tpu.dot_dimension_numbers<[1], [0], [0], [1], [0, 0, 1, 1], [], []>} : vector<8x128xf32>, vector<128x128xf32>, vector<8x128xf32> -> vector<8x128xf32>
    %14 = vector.broadcast %12 : vector<1x128xf32> to vector<8x128xf32>
    %15 = arith.addf %13, %14 : vector<8x128xf32>
    %c0_13 = arith.constant 0 : index
    %c0_14 = arith.constant 0 : index
    %16 = vector.load %arg7[%c0_13, %c0_14] : memref<8x128xf32, #tpu.memory_space<vmem>>, vector<8x128xf32>
    %cst_15 = arith.constant dense<0.000000e+00> : vector<128xf32>
    %17 = vector.multi_reduction <add>, %15, %cst_15 [0] : vector<8x128xf32> to vector<128xf32>
    %18 = vector.shape_cast %17 : vector<128xf32> to vector<1x128xf32>
    %cst_16 = arith.constant 8.000000e+00 : f32
    %19 = vector.broadcast %cst_16 : f32 to vector<1x128xf32>
    %20 = arith.divf %18, %19 : vector<1x128xf32>
    %21 = vector.broadcast %20 : vector<1x128xf32> to vector<8x128xf32>
    %22 = arith.subf %15, %21 : vector<8x128xf32>
    %23 = arith.mulf %22, %22 : vector<8x128xf32>
    %cst_17 = arith.constant dense<0.000000e+00> : vector<128xf32>
    %24 = vector.multi_reduction <add>, %23, %cst_17 [0] : vector<8x128xf32> to vector<128xf32>
    %25 = vector.shape_cast %24 : vector<128xf32> to vector<1x128xf32>
    %cst_18 = arith.constant 8.000000e+00 : f32
    %26 = vector.broadcast %cst_18 : f32 to vector<1x128xf32>
    %27 = arith.divf %25, %26 : vector<1x128xf32>
    %28 = vector.broadcast %20 : vector<1x128xf32> to vector<8x128xf32>
    %29 = arith.subf %15, %28 : vector<8x128xf32>
    %cst_19 = arith.constant 9.99999974E-6 : f32
    %30 = vector.broadcast %cst_19 : f32 to vector<1x128xf32>
    %31 = arith.addf %27, %30 : vector<1x128xf32>
    %32 = math.rsqrt %31 : vector<1x128xf32>
    %33 = vector.broadcast %32 : vector<1x128xf32> to vector<8x128xf32>
    %34 = arith.mulf %29, %33 : vector<8x128xf32>
    %cst_20 = arith.constant 0.000000e+00 : f32
    %35 = vector.broadcast %cst_20 : f32 to vector<8x128xf32>
    %36 = arith.maximumf %34, %35 : vector<8x128xf32>
    %cst_21 = arith.constant 2.000000e-01 : f32
    %37 = vector.broadcast %cst_21 : f32 to vector<8x128xf32>
    %38 = arith.cmpf oge, %16, %37 : vector<8x128xf32>
    %cst_22 = arith.constant 1.250000e+00 : f32
    %39 = vector.broadcast %cst_22 : f32 to vector<8x128xf32>
    %40 = arith.mulf %36, %39 : vector<8x128xf32>
    %cst_23 = arith.constant 0.000000e+00 : f32
    %41 = vector.broadcast %cst_23 : f32 to vector<8x128xf32>
    %42 = arith.select %38, %40, %41 : vector<8x128xi1>, vector<8x128xf32>
    %c0_24 = arith.constant 0 : index
    %c0_25 = arith.constant 0 : index
    %43 = vector.load %arg8[%c0_24, %c0_25] : memref<128x128xf32, #tpu.memory_space<vmem>>, vector<128x128xf32>
    %c0_26 = arith.constant 0 : index
    %c0_27 = arith.constant 0 : index
    %44 = vector.load %arg9[%c0_26, %c0_27] : memref<128x128xf32, #tpu.memory_space<vmem>>, vector<128x128xf32>
    %c0_28 = arith.constant 0 : index
    %c0_29 = arith.constant 0 : index
    %45 = vector.load %arg10[%c0_28, %c0_29] : memref<128x128xf32, #tpu.memory_space<vmem>>, vector<128x128xf32>
    %c0_30 = arith.constant 0 : index
    %c0_31 = arith.constant 0 : index
    %46 = vector.load %arg11[%c0_30, %c0_31] : memref<1x128xf32, #tpu.memory_space<vmem>>, vector<1x128xf32>
    %c0_32 = arith.constant 0 : index
    %c0_33 = arith.constant 0 : index
    %47 = vector.load %arg12[%c0_32, %c0_33] : memref<1x128xf32, #tpu.memory_space<vmem>>, vector<1x128xf32>
    %c0_34 = arith.constant 0 : index
    %c0_35 = arith.constant 0 : index
    %48 = vector.load %arg13[%c0_34, %c0_35] : memref<1x128xf32, #tpu.memory_space<vmem>>, vector<1x128xf32>
    %49 = math.exp %44 : vector<128x128xf32>
    %50 = arith.mulf %49, %45 : vector<128x128xf32>
    %51 = arith.addf %43, %50 : vector<128x128xf32>
    %52 = math.exp %47 : vector<1x128xf32>
    %53 = arith.mulf %52, %48 : vector<1x128xf32>
    %54 = arith.addf %46, %53 : vector<1x128xf32>
    %cst_36 = arith.constant dense<0.000000e+00> : vector<8x128xf32>
    %55 = tpu.matmul %42, %51, %cst_36 {dimension_numbers = #tpu.dot_dimension_numbers<[1], [0], [0], [1], [0, 0, 1, 1], [], []>} : vector<8x128xf32>, vector<128x128xf32>, vector<8x128xf32> -> vector<8x128xf32>
    %56 = vector.broadcast %54 : vector<1x128xf32> to vector<8x128xf32>
    %57 = arith.addf %55, %56 : vector<8x128xf32>
    %c0_37 = arith.constant 0 : index
    %c0_38 = arith.constant 0 : index
    %58 = vector.load %arg14[%c0_37, %c0_38] : memref<8x128xf32, #tpu.memory_space<vmem>>, vector<8x128xf32>
    tpu.vector_store %arg14[%c0_37, %c0_38], %57 {strides = array<i32>} : memref<8x128xf32, #tpu.memory_space<vmem>>, vector<8x128xf32>,
    return
  }
}

</mosaic_0001>

<llo_original>
// kernel: tpu_custom_call.1
$region0: #{tpu_custom_call.1}
  #allocation0 [shape = 'u32[]', space=smem, size = 0x4, offset = 0x4, fixed_abs, tag = 'smem constant byte address 0x4 - core index']
  #allocation1 [shape = 'u32[72,128]{1,0:T(1,128)}', space=vmem, size = 0x9000, scoped, tag = 'internal scratch']
  %s0 = inlined_call_operand.hbm [shape: f32[8,128], index: 0, kind: input, shape index: {}]
  %s1 = inlined_call_operand.hbm [shape: f32[128,128], index: 1, kind: input, shape index: {}]
  %s2 = inlined_call_operand.hbm [shape: f32[128,128], index: 2, kind: input, shape index: {}]
  %s3 = inlined_call_operand.hbm [shape: f32[128,128], index: 3, kind: input, shape index: {}]
  %s4 = inlined_call_operand.vmem [shape: f32[1,128], index: 4, kind: input, shape index: {}]
  %s5 = inlined_call_operand.vmem [shape: f32[1,128], index: 5, kind: input, shape index: {}]
  %s6 = inlined_call_operand.vmem [shape: f32[1,128], index: 6, kind: input, shape index: {}]
  %s7 = inlined_call_operand.hbm [shape: f32[8,128], index: 7, kind: input, shape index: {}]
  %s8 = inlined_call_operand.hbm [shape: f32[128,128], index: 8, kind: input, shape index: {}]
  %s9 = inlined_call_operand.hbm [shape: f32[128,128], index: 9, kind: input, shape index: {}]
  %s10 = inlined_call_operand.hbm [shape: f32[128,128], index: 10, kind: input, shape index: {}]
  %s11 = inlined_call_operand.vmem [shape: f32[1,128], index: 11, kind: input, shape index: {}]
  %s12 = inlined_call_operand.vmem [shape: f32[1,128], index: 12, kind: input, shape index: {}]
  %s13 = inlined_call_operand.vmem [shape: f32[1,128], index: 13, kind: input, shape index: {}]
  %s14 = inlined_call_operand.hbm [shape: f32[8,128], index: 14, kind: output, shape index: {}]
  %s15 = sld [smem:[#allocation0]]
  $region98: #{tpu_custom_call.1} parent=0
    _
  %s17 = ssub.s32 1, %s15
  %s18 = scalar_select 0, %s17, %s15
  $region1: #{tpu_custom_call.1} parent=0
    #allocation2 [shape = 'u8[4096]{0}', space=vmem, size = 0x1000, scoped, tag = 'input window, operand 0, single buffered']
    #allocation3 [shape = 's32[1]{0}', space=sflag, size = 0x4, scoped, tag = 'scoped memory for tpu_custom_call.1']
    #allocation4 [shape = 's32[1]{0}', space=sflag, size = 0x4, scoped, tag = 'scoped memory for tpu_custom_call.1']
    #allocation5 [shape = 'u8[65536]{0}', space=vmem, size = 0x10000, scoped, tag = 'input window, operand 1, single buffered']
    #allocation6 [shape = 's32[1]{0}', space=sflag, size = 0x4, scoped, tag = 'scoped memory for tpu_custom_call.1']
    #allocation7 [shape = 'u8[65536]{0}', space=vmem, size = 0x10000, scoped, tag = 'input window, operand 2, single buffered']
    #allocation8 [shape = 'u8[65536]{0}', space=vmem, size = 0x10000, scoped, tag = 'input window, operand 3, single buffered']
    #allocation9 [shape = 's32[1]{0}', space=sflag, size = 0x4, scoped, tag = 'scoped memory for tpu_custom_call.1']
    #allocation10 [shape = 'u8[4096]{0}', space=vmem, size = 0x1000, scoped, tag = 'input window, operand 7, single buffered']
    #allocation11 [shape = 'u8[65536]{0}', space=vmem, size = 0x10000, scoped, tag = 'input window, operand 8, single buffered']
    #allocation12 [shape = 's32[1]{0}', space=sflag, size = 0x4, scoped, tag = 'scoped memory for tpu_custom_call.1']
    #allocation13 [shape = 'u8[65536]{0}', space=vmem, size = 0x10000, scoped, tag = 'input window, operand 9, single buffered']
    #allocation14 [shape = 'u8[65536]{0}', space=vmem, size = 0x10000, scoped, tag = 'input window, operand 10, single buffered']
    #allocation15 [shape = 's32[1]{0}', space=sflag, size = 0x4, scoped, tag = 'scoped memory for tpu_custom_call.1']
    #allocation16 [shape = 'u8[4096]{0}', space=vmem, size = 0x1000, scoped, tag = 'output window, operand 0, single buffered']
    %19 = vsyncpa [#allocation3], 0
    %20 = vsyncpa [#allocation6], 0
    %21 = vsyncpa [#allocation9], 0
    %22 = vsyncpa [#allocation12], 0
    %23 = vsyncpa [#allocation15], 0
    %24 = vsyncpa [#allocation4], 0
    // Predicated region
    $region2: #{tpu_custom_call.1} parent=1 // pred_check
      _
    $region3: #{tpu_custom_call.1} parent=1 // pred_check_branch
      %26 = sbr.rel (0) target = $region5
    $region4: #{tpu_custom_call.1} parent=1 // pred_region
      %28 = vsyncadd [#allocation3], 0
      %s30 = sshll.u32 %s0, 4
      %s31 = int_to_ptr.hbm [resolvable:$true] %s30
      %s32 = sshll.u32 [#allocation2], 4
      %s33 = int_to_ptr.vmem [resolvable:$true] %s32
      %35 = dma.hbm_to_vmem [thread:$0]  %s31, 128, %s33, [#allocation3]
    $region5: #{tpu_custom_call.1} parent=1 // pred_fallthru
      _
    // Predicated region
    $region6: #{tpu_custom_call.1} parent=1 // pred_check
      _
    $region7: #{tpu_custom_call.1} parent=1 // pred_check_branch
      %37 = sbr.rel (0) target = $region9
    $region8: #{tpu_custom_call.1} parent=1 // pred_region
      %39 = vsyncadd [#allocation6], 0
      %s40 = sshll.u32 %s1, 4
      %s41 = int_to_ptr.hbm [resolvable:$true] %s40
      %s42 = sshll.u32 [#allocation5], 4
      %s43 = int_to_ptr.vmem [resolvable:$true] %s42
      %48 = dma.hbm_to_vmem [thread:$0]  %s41, 2048, %s43, [#allocation6], 128, 128, 8
    $region9: #{tpu_custom_call.1} parent=1 // pred_fallthru
      _
    // Predicated region
    $region10: #{tpu_custom_call.1} parent=1 // pred_check
      _
    $region11: #{tpu_custom_call.1} parent=1 // pred_check_branch
      %50 = sbr.rel (0) target = $region13
    $region12: #{tpu_custom_call.1} parent=1 // pred_region
      %52 = vsyncadd [#allocation6], 0
      %s53 = sshll.u32 %s2, 4
      %s54 = int_to_ptr.hbm [resolvable:$true] %s53
      %s55 = sshll.u32 [#allocation7], 4
      %s56 = int_to_ptr.vmem [resolvable:$true] %s55
      %61 = dma.hbm_to_vmem [thread:$0]  %s54, 2048, %s56, [#allocation6], 128, 128, 8
    $region13: #{tpu_custom_call.1} parent=1 // pred_fallthru
      _
    // Predicated region
    $region14: #{tpu_custom_call.1} parent=1 // pred_check
      _
    $region15: #{tpu_custom_call.1} parent=1 // pred_check_branch
      %63 = sbr.rel (0) target = $region17
    $region16: #{tpu_custom_call.1} parent=1 // pred_region
      %65 = vsyncadd [#allocation9], 0
      %s66 = sshll.u32 %s3, 4
      %s67 = int_to_ptr.hbm [resolvable:$true] %s66
      %s68 = sshll.u32 [#allocation8], 4
      %s69 = int_to_ptr.vmem [resolvable:$true] %s68
      %74 = dma.hbm_to_vmem [thread:$0]  %s67, 2048, %s69, [#allocation9], 128, 128, 8
    $region17: #{tpu_custom_call.1} parent=1 // pred_fallthru
      _
    // Predicated region
    $region18: #{tpu_custom_call.1} parent=1 // pred_check
      _
    $region19: #{tpu_custom_call.1} parent=1 // pred_check_branch
      %76 = sbr.rel (0) target = $region21
    $region20: #{tpu_custom_call.1} parent=1 // pred_region
      _
    $region21: #{tpu_custom_call.1} parent=1 // pred_fallthru
      _
    // Predicated region
    $region22: #{tpu_custom_call.1} parent=1 // pred_check
      _
    $region23: #{tpu_custom_call.1} parent=1 // pred_check_branch
      %78 = sbr.rel (0) target = $region25
    $region24: #{tpu_custom_call.1} parent=1 // pred_region
      _
    $region25: #{tpu_custom_call.1} parent=1 // pred_fallthru
      _
    // Predicated region
    $region26: #{tpu_custom_call.1} parent=1 // pred_check
      _
    $region27: #{tpu_custom_call.1} parent=1 // pred_check_branch
      %80 = sbr.rel (0) target = $region29
    $region28: #{tpu_custom_call.1} parent=1 // pred_region
      _
    $region29: #{tpu_custom_call.1} parent=1 // pred_fallthru
      _
    // Predicated region
    $region30: #{tpu_custom_call.1} parent=1 // pred_check
      _
    $region31: #{tpu_custom_call.1} parent=1 // pred_check_branch
      %82 = sbr.rel (0) target = $region33
    $region32: #{tpu_custom_call.1} parent=1 // pred_region
      %84 = vsyncadd [#allocation9], 0
      %s86 = sshll.u32 %s7, 4
      %s87 = int_to_ptr.hbm [resolvable:$true] %s86
      %s88 = sshll.u32 [#allocation10], 4
      %s89 = int_to_ptr.vmem [resolvable:$true] %s88
      %91 = dma.hbm_to_vmem [thread:$0]  %s87, 128, %s89, [#allocation9]
    $region33: #{tpu_custom_call.1} parent=1 // pred_fallthru
      _
    // Predicated region
    $region34: #{tpu_custom_call.1} parent=1 // pred_check
      _
    $region35: #{tpu_custom_call.1} parent=1 // pred_check_branch
      %93 = sbr.rel (0) target = $region37
    $region36: #{tpu_custom_call.1} parent=1 // pred_region
      %95 = vsyncadd [#allocation12], 0
      %s96 = sshll.u32 %s8, 4
      %s97 = int_to_ptr.hbm [resolvable:$true] %s96
      %s98 = sshll.u32 [#allocation11], 4
      %s99 = int_to_ptr.vmem [resolvable:$true] %s98
      %104 = dma.hbm_to_vmem [thread:$0]  %s97, 2048, %s99, [#allocation12], 128, 128, 8
    $region37: #{tpu_custom_call.1} parent=1 // pred_fallthru
      _
    // Predicated region
    $region38: #{tpu_custom_call.1} parent=1 // pred_check
      _
    $region39: #{tpu_custom_call.1} parent=1 // pred_check_branch
      %106 = sbr.rel (0) target = $region41
    $region40: #{tpu_custom_call.1} parent=1 // pred_region
      %108 = vsyncadd [#allocation12], 0
      %s109 = sshll.u32 %s9, 4
      %s110 = int_to_ptr.hbm [resolvable:$true] %s109
      %s111 = sshll.u32 [#allocation13], 4
      %s112 = int_to_ptr.vmem [resolvable:$true] %s111
      %117 = dma.hbm_to_vmem [thread:$0]  %s110, 2048, %s112, [#allocation12], 128, 128, 8
    $region41: #{tpu_custom_call.1} parent=1 // pred_fallthru
      _
    // Predicated region
    $region42: #{tpu_custom_call.1} parent=1 // pred_check
      _
    $region43: #{tpu_custom_call.1} parent=1 // pred_check_branch
      %119 = sbr.rel (0) target = $region45
    $region44: #{tpu_custom_call.1} parent=1 // pred_region
      %121 = vsyncadd [#allocation15], 0
      %s122 = sshll.u32 %s10, 4
      %s123 = int_to_ptr.hbm [resolvable:$true] %s122
      %s124 = sshll.u32 [#allocation14], 4
      %s125 = int_to_ptr.vmem [resolvable:$true] %s124
      %130 = dma.hbm_to_vmem [thread:$0]  %s123, 2048, %s125, [#allocation15], 128, 128, 8
    $region45: #{tpu_custom_call.1} parent=1 // pred_fallthru
      _
    // Predicated region
    $region46: #{tpu_custom_call.1} parent=1 // pred_check
      _
    $region47: #{tpu_custom_call.1} parent=1 // pred_check_branch
      %132 = sbr.rel (0) target = $region49
    $region48: #{tpu_custom_call.1} parent=1 // pred_region
      _
    $region49: #{tpu_custom_call.1} parent=1 // pred_fallthru
      _
    // Predicated region
    $region50: #{tpu_custom_call.1} parent=1 // pred_check
      _
    $region51: #{tpu_custom_call.1} parent=1 // pred_check_branch
      %134 = sbr.rel (0) target = $region53
    $region52: #{tpu_custom_call.1} parent=1 // pred_region
      _
    $region53: #{tpu_custom_call.1} parent=1 // pred_fallthru
      _
    // Predicated region
    $region54: #{tpu_custom_call.1} parent=1 // pred_check
      _
    $region55: #{tpu_custom_call.1} parent=1 // pred_check_branch
      %136 = sbr.rel (0) target = $region57
    $region56: #{tpu_custom_call.1} parent=1 // pred_region
      _
    $region57: #{tpu_custom_call.1} parent=1 // pred_fallthru
      _
    // Predicated region
    $region58: #{tpu_custom_call.1} parent=1 // pred_check
      _
    $region59: #{tpu_custom_call.1} parent=1 // pred_check_branch
      %138 = sbr.rel (0) target = $region61
    $region60: #{tpu_custom_call.1} parent=1 // pred_region
      %140 = dma.done [#allocation3], 128
    $region61: #{tpu_custom_call.1} parent=1 // pred_fallthru
      _
    // Predicated region
    $region62: #{tpu_custom_call.1} parent=1 // pred_check
      _
    $region63: #{tpu_custom_call.1} parent=1 // pred_check_branch
      %142 = sbr.rel (0) target = $region65
    $region64: #{tpu_custom_call.1} parent=1 // pred_region
      %144 = dma.done [#allocation6], 2048
    $region65: #{tpu_custom_call.1} parent=1 // pred_fallthru
      _
    // Predicated region
    $region66: #{tpu_custom_call.1} parent=1 // pred_check
      _
    $region67: #{tpu_custom_call.1} parent=1 // pred_check_branch
      %146 = sbr.rel (0) target = $region69
    $region68: #{tpu_custom_call.1} parent=1 // pred_region
      %148 = dma.done [#allocation6], 2048
    $region69: #{tpu_custom_call.1} parent=1 // pred_fallthru
      _
    // Predicated region
    $region70: #{tpu_custom_call.1} parent=1 // pred_check
      _
    $region71: #{tpu_custom_call.1} parent=1 // pred_check_branch
      %150 = sbr.rel (0) target = $region73
    $region72: #{tpu_custom_call.1} parent=1 // pred_region
      %152 = dma.done [#allocation9], 2048
    $region73: #{tpu_custom_call.1} parent=1 // pred_fallthru
      _
    // Predicated region
    $region74: #{tpu_custom_call.1} parent=1 // pred_check
      _
    $region75: #{tpu_custom_call.1} parent=1 // pred_check_branch
      %154 = sbr.rel (0) target = $region77
    $region76: #{tpu_custom_call.1} parent=1 // pred_region
      %156 = dma.done [#allocation9], 128
    $region77: #{tpu_custom_call.1} parent=1 // pred_fallthru
      _
    // Predicated region
    $region78: #{tpu_custom_call.1} parent=1 // pred_check
      _
    $region79: #{tpu_custom_call.1} parent=1 // pred_check_branch
      %158 = sbr.rel (0) target = $region81
    $region80: #{tpu_custom_call.1} parent=1 // pred_region
      %160 = dma.done [#allocation12], 2048
    $region81: #{tpu_custom_call.1} parent=1 // pred_fallthru
      _
    // Predicated region
    $region82: #{tpu_custom_call.1} parent=1 // pred_check
      _
    $region83: #{tpu_custom_call.1} parent=1 // pred_check_branch
      %162 = sbr.rel (0) target = $region85
    $region84: #{tpu_custom_call.1} parent=1 // pred_region
      %164 = dma.done [#allocation12], 2048
    $region85: #{tpu_custom_call.1} parent=1 // pred_fallthru
      _
    // Predicated region
    $region86: #{tpu_custom_call.1} parent=1 // pred_check
      _
    $region87: #{tpu_custom_call.1} parent=1 // pred_check_branch
      %166 = sbr.rel (0) target = $region89
    $region88: #{tpu_custom_call.1} parent=1 // pred_region
      %168 = dma.done [#allocation15], 2048
    $region89: #{tpu_custom_call.1} parent=1 // pred_fallthru
      _
    %v169 = vld [vmem:[#allocation2] sm:$0xff]
    %v170 = vld [vmem:[#allocation5] sm:$0xff]
    %v171 = vld [vmem:[#allocation5 + $0x8] sm:$0xff]
    %v172 = vld [vmem:[#allocation5 + $0x10] sm:$0xff]
    %v173 = vld [vmem:[#allocation5 + $0x18] sm:$0xff]
    %v174 = vld [vmem:[#allocation5 + $0x20] sm:$0xff]
    %v175 = vld [vmem:[#allocation5 + $0x28] sm:$0xff]
    %v176 = vld [vmem:[#allocation5 + $0x30] sm:$0xff]
    %v177 = vld [vmem:[#allocation5 + $0x38] sm:$0xff]
    %v178 = vld [vmem:[#allocation5 + $0x40] sm:$0xff]
    %v179 = vld [vmem:[#allocation5 + $0x48] sm:$0xff]
    %v180 = vld [vmem:[#allocation5 + $0x50] sm:$0xff]
    %v181 = vld [vmem:[#allocation5 + $0x58] sm:$0xff]
    %v182 = vld [vmem:[#allocation5 + $0x60] sm:$0xff]
    %v183 = vld [vmem:[#allocation5 + $0x68] sm:$0xff]
    %v184 = vld [vmem:[#allocation5 + $0x70] sm:$0xff]
    %v185 = vld [vmem:[#allocation5 + $0x78] sm:$0xff]
    %v186 = vld [vmem:[#allocation7] sm:$0xff]
    %v187 = vld [vmem:[#allocation7 + $0x8] sm:$0xff]
    %v188 = vld [vmem:[#allocation7 + $0x10] sm:$0xff]
    %v189 = vld [vmem:[#allocation7 + $0x18] sm:$0xff]
    %v190 = vld [vmem:[#allocation7 + $0x20] sm:$0xff]
    %v191 = vld [vmem:[#allocation7 + $0x28] sm:$0xff]
    %v192 = vld [vmem:[#allocation7 + $0x30] sm:$0xff]
    %v193 = vld [vmem:[#allocation7 + $0x38] sm:$0xff]
    %v194 = vld [vmem:[#allocation7 + $0x40] sm:$0xff]
    %v195 = vld [vmem:[#allocation7 + $0x48] sm:$0xff]
    %v196 = vld [vmem:[#allocation7 + $0x50] sm:$0xff]
    %v197 = vld [vmem:[#allocation7 + $0x58] sm:$0xff]
    %v198 = vld [vmem:[#allocation7 + $0x60] sm:$0xff]
    %v199 = vld [vmem:[#allocation7 + $0x68] sm:$0xff]
    %v200 = vld [vmem:[#allocation7 + $0x70] sm:$0xff]
    %v201 = vld [vmem:[#allocation7 + $0x78] sm:$0xff]
    %v202 = vld [vmem:[#allocation8] sm:$0xff]
    %v203 = vld [vmem:[#allocation8 + $0x8] sm:$0xff]
    %v204 = vld [vmem:[#allocation8 + $0x10] sm:$0xff]
    %v205 = vld [vmem:[#allocation8 + $0x18] sm:$0xff]
    %v206 = vld [vmem:[#allocation8 + $0x20] sm:$0xff]
    %v207 = vld [vmem:[#allocation8 + $0x28] sm:$0xff]
    %v208 = vld [vmem:[#allocation8 + $0x30] sm:$0xff]
    %v209 = vld [vmem:[#allocation8 + $0x38] sm:$0xff]
    %v210 = vld [vmem:[#allocation8 + $0x40] sm:$0xff]
    %v211 = vld [vmem:[#allocation8 + $0x48] sm:$0xff]
    %v212 = vld [vmem:[#allocation8 + $0x50] sm:$0xff]
    %v213 = vld [vmem:[#allocation8 + $0x58] sm:$0xff]
    %v214 = vld [vmem:[#allocation8 + $0x60] sm:$0xff]
    %v215 = vld [vmem:[#allocation8 + $0x68] sm:$0xff]
    %v216 = vld [vmem:[#allocation8 + $0x70] sm:$0xff]
    %v217 = vld [vmem:[#allocation8 + $0x78] sm:$0xff]
    %v218 = vld [vmem:[%s4] sm:$0x1]
    %v219 = vld [vmem:[%s5] sm:$0x1]
    %v220 = vld [vmem:[%s6] sm:$0x1]
    %v221 = vmul.f32 %v186, 1.442695
    %v222 = vpow.pop %v221
    %v223 = vmul.f32 %v187, 1.442695
    %v224 = vpow.pop %v223
    %v225 = vmul.f32 %v188, 1.442695
    %v226 = vpow.pop %v225
    %v227 = vmul.f32 %v189, 1.442695
    %v228 = vpow.pop %v227
    %v229 = vmul.f32 %v190, 1.442695
    %v230 = vpow.pop %v229
    %v231 = vmul.f32 %v191, 1.442695
    %v232 = vpow.pop %v231
    %v233 = vmul.f32 %v192, 1.442695
    %v234 = vpow.pop %v233
    %v235 = vmul.f32 %v193, 1.442695
    %v236 = vpow.pop %v235
    %v237 = vmul.f32 %v194, 1.442695
    %v238 = vpow.pop %v237
    %v239 = vmul.f32 %v195, 1.442695
    %v240 = vpow.pop %v239
    %v241 = vmul.f32 %v196, 1.442695
    %v242 = vpow.pop %v241
    %v243 = vmul.f32 %v197, 1.442695
    %v244 = vpow.pop %v243
    %v245 = vmul.f32 %v198, 1.442695
    %v246 = vpow.pop %v245
    %v247 = vmul.f32 %v199, 1.442695
    %v248 = vpow.pop %v247
    %v249 = vmul.f32 %v200, 1.442695
    %v250 = vpow.pop %v249
    %v251 = vmul.f32 %v201, 1.442695
    %v252 = vpow.pop %v251
    %v253 = vmul.f32 %v222, %v202
    %v254 = vmul.f32 %v224, %v203
    %v255 = vmul.f32 %v226, %v204
    %v256 = vmul.f32 %v228, %v205
    %v257 = vmul.f32 %v230, %v206
    %v258 = vmul.f32 %v232, %v207
    %v259 = vmul.f32 %v234, %v208
    %v260 = vmul.f32 %v236, %v209
    %v261 = vmul.f32 %v238, %v210
    %v262 = vmul.f32 %v240, %v211
    %v263 = vmul.f32 %v242, %v212
    %v264 = vmul.f32 %v244, %v213
    %v265 = vmul.f32 %v246, %v214
    %v266 = vmul.f32 %v248, %v215
    %v267 = vmul.f32 %v250, %v216
    %v268 = vmul.f32 %v252, %v217
    %v269 = vadd.f32 %v170, %v253
    %v270 = vadd.f32 %v171, %v254
    %v271 = vadd.f32 %v172, %v255
    %v272 = vadd.f32 %v173, %v256
    %v273 = vadd.f32 %v174, %v257
    %v274 = vadd.f32 %v175, %v258
    %v275 = vadd.f32 %v176, %v259
    %v276 = vadd.f32 %v177, %v260
    %v277 = vadd.f32 %v178, %v261
    %v278 = vadd.f32 %v179, %v262
    %v279 = vadd.f32 %v180, %v263
    %v280 = vadd.f32 %v181, %v264
    %v281 = vadd.f32 %v182, %v265
    %v282 = vadd.f32 %v183, %v266
    %v283 = vadd.f32 %v184, %v267
    %v284 = vadd.f32 %v185, %v268
    %v285 = vmul.f32 %v219, 1.442695
    %v286 = vpow.pop %v285
    %v287 = vmul.f32 %v286, %v220
    %v288 = vadd.f32 %v218, %v287
    %v290 = vperm.slane %v288, 0
    %292 = vmatpush.msra.mxu0 %v284
    %293 = vmatpush.msra.mxu0 %v283
    %294 = vmatpush.msra.mxu0 %v282
    %295 = vmatpush.msra.mxu0 %v281
    %296 = vmatpush.msra.mxu0 %v280
    %297 = vmatpush.msra.mxu0 %v279
    %298 = vmatpush.msra.mxu0 %v278
    %299 = vmatpush.msra.mxu0 %v277
    %300 = vmatpush.msra.mxu0 %v276
    %301 = vmatpush.msra.mxu0 %v275
    %302 = vmatpush.msra.mxu0 %v274
    %303 = vmatpush.msra.mxu0 %v273
    %304 = vmatpush.msra.mxu0 %v272
    %305 = vmatpush.msra.mxu0 %v271
    %306 = vmatpush.msra.mxu0 %v270
    %307 = vmatpush.msra.mxu0 %v269
    %308 = vmatmul.f32.gmra.mxu0 %v169
    %v309 = vpop.f32.mrf.mxu0
    %v310 = vadd.f32 %v290, %v309
    %311 = vdwg.mxu0
    %v312 = vld [vmem:[#allocation10] sm:$0xff]
    %v313 = vrot.slane %v310, 4
    %v314 = vadd.f32 %v310, %v313
    %v315 = vrot.slane %v314, 2
    %v316 = vadd.f32 %v314, %v315
    %v317 = vrot.slane %v316, 1
    %v318 = vadd.f32 %v316, %v317
    %v319 = vrcp.pop 8.0
    %v320 = vmul.f32 8.0, %v319
    %v321 = vsub.f32 1.0, %v320
    %v322 = vmul.f32 %v319, %v321
    %v323 = vadd.f32 %v319, %v322
    %vm324 = vweird.f32 %v319
    %v325 = vsel %vm324, %v319, %v323
    %v326 = vmul.f32 %v318, %v325
    %v327 = vsub.f32 %v310, %v326
    %v328 = vmul.f32 %v327, %v327
    %v329 = vrot.slane %v328, 4
    %v330 = vadd.f32 %v328, %v329
    %v331 = vrot.slane %v330, 2
    %v332 = vadd.f32 %v330, %v331
    %v333 = vrot.slane %v332, 1
    %v334 = vadd.f32 %v332, %v333
    %v335 = vmul.f32 %v334, %v325
    %v336 = vadd.f32 %v335, 1e-05
    %v337 = vrsqrt.pop %v336
    %v338 = vmul.f32 %v337, %v336
    %v339 = vmul.f32 %v338, %v337
    %v340 = vmul.f32 0.5, %v339
    %v341 = vsub.f32 1.5, %v340
    %v342 = vmul.f32 %v337, %v341
    %vm343 = vweird.f32 %v336
    %vm344 = vweird.f32 %v337
    %vm345 = vmor %vm343, %vm344
    %v346 = vsel %vm345, %v337, %v342
    %v347 = vmul.f32 %v327, %v346
    %v348 = vmax.f32 %v347, 0.0
    %vm349 = vcmp.ge.f32.partialorder %v312, 0.2
    %v350 = vmul.f32 %v348, 1.25
    %v351 = vsel %vm349, %v350, 0.0
    %v352 = vld [vmem:[#allocation11] sm:$0xff]
    %v353 = vld [vmem:[#allocation11 + $0x8] sm:$0xff]
    %v354 = vld [vmem:[#allocation11 + $0x10] sm:$0xff]
    %v355 = vld [vmem:[#allocation11 + $0x18] sm:$0xff]
    %v356 = vld [vmem:[#allocation11 + $0x20] sm:$0xff]
    %v357 = vld [vmem:[#allocation11 + $0x28] sm:$0xff]
    %v358 = vld [vmem:[#allocation11 + $0x30] sm:$0xff]
    %v359 = vld [vmem:[#allocation11 + $0x38] sm:$0xff]
    %v360 = vld [vmem:[#allocation11 + $0x40] sm:$0xff]
    %v361 = vld [vmem:[#allocation11 + $0x48] sm:$0xff]
    %v362 = vld [vmem:[#allocation11 + $0x50] sm:$0xff]
    %v363 = vld [vmem:[#allocation11 + $0x58] sm:$0xff]
    %v364 = vld [vmem:[#allocation11 + $0x60] sm:$0xff]
    %v365 = vld [vmem:[#allocation11 + $0x68] sm:$0xff]
    %v366 = vld [vmem:[#allocation11 + $0x70] sm:$0xff]
    %v367 = vld [vmem:[#allocation11 + $0x78] sm:$0xff]
    %v368 = vld [vmem:[#allocation13] sm:$0xff]
    %v369 = vld [vmem:[#allocation13 + $0x8] sm:$0xff]
    %v370 = vld [vmem:[#allocation13 + $0x10] sm:$0xff]
    %v371 = vld [vmem:[#allocation13 + $0x18] sm:$0xff]
    %v372 = vld [vmem:[#allocation13 + $0x20] sm:$0xff]
    %v373 = vld [vmem:[#allocation13 + $0x28] sm:$0xff]
    %v374 = vld [vmem:[#allocation13 + $0x30] sm:$0xff]
    %v375 = vld [vmem:[#allocation13 + $0x38] sm:$0xff]
    %v376 = vld [vmem:[#allocation13 + $0x40] sm:$0xff]
    %v377 = vld [vmem:[#allocation13 + $0x48] sm:$0xff]
    %v378 = vld [vmem:[#allocation13 + $0x50] sm:$0xff]
    %v379 = vld [vmem:[#allocation13 + $0x58] sm:$0xff]
    %v380 = vld [vmem:[#allocation13 + $0x60] sm:$0xff]
    %v381 = vld [vmem:[#allocation13 + $0x68] sm:$0xff]
    %v382 = vld [vmem:[#allocation13 + $0x70] sm:$0xff]
    %v383 = vld [vmem:[#allocation13 + $0x78] sm:$0xff]
    %v384 = vld [vmem:[#allocation14] sm:$0xff]
    %v385 = vld [vmem:[#allocation14 + $0x8] sm:$0xff]
    %v386 = vld [vmem:[#allocation14 + $0x10] sm:$0xff]
    %v387 = vld [vmem:[#allocation14 + $0x18] sm:$0xff]
    %v388 = vld [vmem:[#allocation14 + $0x20] sm:$0xff]
    %v389 = vld [vmem:[#allocation14 + $0x28] sm:$0xff]
    %v390 = vld [vmem:[#allocation14 + $0x30] sm:$0xff]
    %v391 = vld [vmem:[#allocation14 + $0x38] sm:$0xff]
    %v392 = vld [vmem:[#allocation14 + $0x40] sm:$0xff]
    %v393 = vld [vmem:[#allocation14 + $0x48] sm:$0xff]
    %v394 = vld [vmem:[#allocation14 + $0x50] sm:$0xff]
    %v395 = vld [vmem:[#allocation14 + $0x58] sm:$0xff]
    %v396 = vld [vmem:[#allocation14 + $0x60] sm:$0xff]
    %v397 = vld [vmem:[#allocation14 + $0x68] sm:$0xff]
    %v398 = vld [vmem:[#allocation14 + $0x70] sm:$0xff]
    %v399 = vld [vmem:[#allocation14 + $0x78] sm:$0xff]
    %v400 = vld [vmem:[%s11] sm:$0x1]
    %v401 = vld [vmem:[%s12] sm:$0x1]
    %v402 = vld [vmem:[%s13] sm:$0x1]
    %v403 = vmul.f32 %v368, 1.442695
    %v404 = vpow.pop %v403
    %v405 = vmul.f32 %v369, 1.442695
    %v406 = vpow.pop %v405
    %v407 = vmul.f32 %v370, 1.442695
    %v408 = vpow.pop %v407
    %v409 = vmul.f32 %v371, 1.442695
    %v410 = vpow.pop %v409
    %v411 = vmul.f32 %v372, 1.442695
    %v412 = vpow.pop %v411
    %v413 = vmul.f32 %v373, 1.442695
    %v414 = vpow.pop %v413
    %v415 = vmul.f32 %v374, 1.442695
    %v416 = vpow.pop %v415
    %v417 = vmul.f32 %v375, 1.442695
    %v418 = vpow.pop %v417
    %v419 = vmul.f32 %v376, 1.442695
    %v420 = vpow.pop %v419
    %v421 = vmul.f32 %v377, 1.442695
    %v422 = vpow.pop %v421
    %v423 = vmul.f32 %v378, 1.442695
    %v424 = vpow.pop %v423
    %v425 = vmul.f32 %v379, 1.442695
    %v426 = vpow.pop %v425
    %v427 = vmul.f32 %v380, 1.442695
    %v428 = vpow.pop %v427
    %v429 = vmul.f32 %v381, 1.442695
    %v430 = vpow.pop %v429
    %v431 = vmul.f32 %v382, 1.442695
    %v432 = vpow.pop %v431
    %v433 = vmul.f32 %v383, 1.442695
    %v434 = vpow.pop %v433
    %v435 = vmul.f32 %v404, %v384
    %v436 = vmul.f32 %v406, %v385
    %v437 = vmul.f32 %v408, %v386
    %v438 = vmul.f32 %v410, %v387
    %v439 = vmul.f32 %v412, %v388
    %v440 = vmul.f32 %v414, %v389
    %v441 = vmul.f32 %v416, %v390
    %v442 = vmul.f32 %v418, %v391
    %v443 = vmul.f32 %v420, %v392
    %v444 = vmul.f32 %v422, %v393
    %v445 = vmul.f32 %v424, %v394
    %v446 = vmul.f32 %v426, %v395
    %v447 = vmul.f32 %v428, %v396
    %v448 = vmul.f32 %v430, %v397
    %v449 = vmul.f32 %v432, %v398
    %v450 = vmul.f32 %v434, %v399
    %v451 = vadd.f32 %v352, %v435
    %v452 = vadd.f32 %v353, %v436
    %v453 = vadd.f32 %v354, %v437
    %v454 = vadd.f32 %v355, %v438
    %v455 = vadd.f32 %v356, %v439
    %v456 = vadd.f32 %v357, %v440
    %v457 = vadd.f32 %v358, %v441
    %v458 = vadd.f32 %v359, %v442
    %v459 = vadd.f32 %v360, %v443
    %v460 = vadd.f32 %v361, %v444
    %v461 = vadd.f32 %v362, %v445
    %v462 = vadd.f32 %v363, %v446
    %v463 = vadd.f32 %v364, %v447
    %v464 = vadd.f32 %v365, %v448
    %v465 = vadd.f32 %v366, %v449
    %v466 = vadd.f32 %v367, %v450
    %v467 = vmul.f32 %v401, 1.442695
    %v468 = vpow.pop %v467
    %v469 = vmul.f32 %v468, %v402
    %v470 = vadd.f32 %v400, %v469
    %v472 = vperm.slane %v470, 0
    %474 = vmatpush.msra.mxu0 %v466
    %475 = vmatpush.msra.mxu0 %v465
    %476 = vmatpush.msra.mxu0 %v464
    %477 = vmatpush.msra.mxu0 %v463
    %478 = vmatpush.msra.mxu0 %v462
    %479 = vmatpush.msra.mxu0 %v461
    %480 = vmatpush.msra.mxu0 %v460
    %481 = vmatpush.msra.mxu0 %v459
    %482 = vmatpush.msra.mxu0 %v458
    %483 = vmatpush.msra.mxu0 %v457
    %484 = vmatpush.msra.mxu0 %v456
    %485 = vmatpush.msra.mxu0 %v455
    %486 = vmatpush.msra.mxu0 %v454
    %487 = vmatpush.msra.mxu0 %v453
    %488 = vmatpush.msra.mxu0 %v452
    %489 = vmatpush.msra.mxu0 %v451
    %490 = vmatmul.f32.gmra.mxu0 %v351
    %v491 = vpop.f32.mrf.mxu0
    %v492 = vadd.f32 %v472, %v491
    %493 = vdwg.mxu0
    %494 = vst [vmem:[#allocation16] sm:$0xff] %v492
    // Predicated region
    $region90: #{tpu_custom_call.1} parent=1 // pred_check
      _
    $region91: #{tpu_custom_call.1} parent=1 // pred_check_branch
      %496 = sbr.rel (0) target = $region93
    $region92: #{tpu_custom_call.1} parent=1 // pred_region
      %498 = vsyncadd [#allocation4], 0
      %s500 = sshll.u32 [#allocation16], 4
      %s501 = int_to_ptr.vmem [resolvable:$true] %s500
      %s502 = sshll.u32 %s14, 4
      %s503 = int_to_ptr.hbm [resolvable:$true] %s502
      %505 = dma.vmem_to_hbm [thread:$0]  %s501, 128, %s503, [#allocation4]
    $region93: #{tpu_custom_call.1} parent=1 // pred_fallthru
      _
    // Predicated region
    $region94: #{tpu_custom_call.1} parent=1 // pred_check
      _
    $region95: #{tpu_custom_call.1} parent=1 // pred_check_branch
      %507 = sbr.rel (0) target = $region97
    $region96: #{tpu_custom_call.1} parent=1 // pred_region
      %509 = dma.done [#allocation4], 128
    $region97: #{tpu_custom_call.1} parent=1 // pred_fallthru
      _
    %510 = vsyncpa [#allocation3], 1
    %511 = vsyncpa [#allocation6], 1
    %512 = vsyncpa [#allocation9], 1
    %513 = vsyncpa [#allocation12], 1
    %514 = vsyncpa [#allocation15], 1
    %515 = vsyncpa [#allocation4], 1

</llo_original>
